<compile_context>
chip_gen: v6e
topology: v6e:2x2x1
jax: 0.10.0
libtpu: 0.0.40
codegen_flags: <defaults>
</compile_context>

<pallas_src>
import functools
import math

import jax
import jax.numpy as jnp
from jax import lax
from jax.experimental import pallas as pl
from jax.experimental.pallas import tpu as pltpu


# ---------------------------------------------------------------------------
# Kernel
# ---------------------------------------------------------------------------
def _gaussian_mlp_kernel(x_ref, *rest, out_dim, fused):
    """rest = (w1, b1, ..., wL, bL, out_ref)   (fused chain or both branches).

    x_ref:   (in_dim, TB)  feature-major batch tile
    out_ref: (2*out, TB)   rows [0:out) = mu, rows [out:2*out) = softplus(logvar)
    """
    *param_refs, out_ref = rest
    xt = x_ref[...].astype(jnp.float32)

    def run_chain(params):
        h = xt
        n = len(params) // 2
        for layer in range(n):
            w = params[2 * layer][...]
            b = params[2 * layer + 1][...].astype(jnp.float32)
            # Activations cast to the weight storage dtype (f32 or bf16);
            # the MXU accumulates in f32 via preferred_element_type.
            h = jnp.dot(w, h.astype(w.dtype),
                        preferred_element_type=jnp.float32) + b
            if layer < n - 1:
                h = jnp.maximum(h, 0.0)          # ReLU on hidden layers only
        return h

    if fused:
        h = run_chain(list(param_refs))          # fused: mu rows on top, lv rows below
        mu = h[:out_dim, :]
        lv = h[out_dim:, :]
    else:
        half = len(param_refs) // 2
        mu = run_chain(list(param_refs[:half]))
        lv = run_chain(list(param_refs[half:]))

    # F.softplus (beta=1, threshold=20) on the logvar half only:
    #   x if x > 20 else log1p(exp(x)), with a min-guard so exp never overflows.
    sp = jnp.where(lv > 20.0, lv, jnp.log1p(jnp.exp(jnp.minimum(lv, 20.0))))
    out_ref[:out_dim, :] = mu.astype(out_ref.dtype)
    out_ref[out_dim:, :] = sp.astype(out_ref.dtype)


# ---------------------------------------------------------------------------
# Parameter packing (call ONCE at init time, outside jit)
# ---------------------------------------------------------------------------
def pack_gaussian_mlp_params(mu_params, logvar_params, *,
                             param_dtype=jnp.float32,
                             fuse_width_threshold=128):
    """Pack the two MLPs for the kernel.

    mu_params / logvar_params: flat tuples (w1, b1, ..., wL, bL) with weights
    in PyTorch Linear layout (out_features, in_features) and biases
    (out_features,) or (out_features, 1).

    If every layer width is below `fuse_width_threshold` (MXU lane width), the
    two branches are fused into a single chain (layer 1 row-concat, layers
    2..L block-diagonal) so the kernel issues L wide matmuls instead of 2L
    narrow ones.  For wide layers fusion would burn 2x MXU FLOPs on structural
    zeros, so the branches are kept separate instead.

    Returns (packed_params, output_dim, fused).
    """
    assert len(mu_params) == len(logvar_params) and len(mu_params) % 2 == 0
    n_layers = len(mu_params) // 2
    output_dim = int(mu_params[-2].shape[0])
    widths = [int(mu_params[2 * l].shape[0]) for l in range(n_layers)]
    fused = all(w < fuse_width_threshold for w in widths)

    if not fused:
        packed = []
        for branch in (mu_params, logvar_params):
            for l in range(n_layers):
                packed.append(branch[2 * l].astype(param_dtype))
                packed.append(branch[2 * l + 1].reshape(-1, 1).astype(jnp.float32))
        return tuple(packed), output_dim, False

    packed = []
    for l in range(n_layers):
        mw, mb = mu_params[2 * l], mu_params[2 * l + 1].reshape(-1, 1)
        lw, lb = logvar_params[2 * l], logvar_params[2 * l + 1].reshape(-1, 1)
        if l == 0:
            w = jnp.concatenate([mw, lw], axis=0)                       # (2H1, in)
        else:
            top = jnp.concatenate(
                [mw, jnp.zeros((mw.shape[0], lw.shape[1]), mw.dtype)], axis=1)
            bot = jnp.concatenate(
                [jnp.zeros((lw.shape[0], mw.shape[1]), lw.dtype), lw], axis=1)
            w = jnp.concatenate([top, bot], axis=0)                     # block-diag
        b = jnp.concatenate([mb, lb], axis=0)                           # (2*out_k, 1)
        packed += [w.astype(param_dtype), b.astype(jnp.float32)]
    return tuple(packed), output_dim, True


# ---------------------------------------------------------------------------
# Batch-tile selection (no wrapper-side padding)
# ---------------------------------------------------------------------------
def _choose_batch_tile(batch, block_batch):
    """Pick a lane-aligned batch tile that divides `batch` exactly.

    Prefers multiples of 128 (lane width) and at least 2 grid steps (v7x has
    2 TensorCores).  Falls back to a single full-batch block when the batch is
    small or not lane-aligned (a block dim equal to the full array dim is
    always legal)."""
    if batch % 128 == 0 and batch >= 256:
        units = batch // 128
        want = max(1, min(block_batch // 128, units // 2))   # >=2 grid steps
        best = 1
        d = 1
        while d * d <= units:
            if units % d == 0:
                for cand in (d, units // d):
                    if cand <= want:
                        best = max(best, cand)
            d += 1
        return 128 * best
    # TODO(synk): for very large, non-multiple-of-128 batches, mask the ragged
    # tail in-kernel instead of falling back to one full-batch block.
    return batch


# ---------------------------------------------------------------------------
# Forward wrapper
# ---------------------------------------------------------------------------
def gaussian_mlp_forward(x, packed_params, *, output_dim, fused,
                         block_batch=2048, single_buffer_weights=True):
    """Run the kernel. Returns (mu, softplus(logvar)), each (batch, out)."""
    batch, in_dim = x.shape
    fused_out = 2 * output_dim

    tb = _choose_batch_tile(batch, block_batch)
    assert batch % tb == 0
    grid = (batch // tb,)

    # Feature-major (transposed) dataflow: batch becomes the lane dimension so
    # x loads and the (2*out, TB) output stores are lane-dense (unmasked vst)
    # even when in_dim / out_dim are far below 128 lanes.
    xt = x.T
    # TODO(synk): accept feature-major activations directly from the producer
    # to avoid this extra HBM transpose pass over x.

    weight_bytes = sum(int(p.size) * p.dtype.itemsize for p in packed_params)
    flops = sum(2 * batch * int(w.shape[0]) * int(w.shape[1])
                for w in packed_params[::2])
    cost = pl.CostEstimate(
        flops=int(flops),
        transcendentals=int(2 * batch * output_dim),   # exp + log1p, logvar half only
        bytes_accessed=int(batch * in_dim * x.dtype.itemsize
                           + weight_bytes + batch * fused_out * 4),
    )

    # VMEM budget: double-buffered x/out tiles + (single-buffered) weights +
    # live activations of the widest layer for both branches; capped at 64 MiB
    # so it stays within a v7x TensorCore's physical VMEM.
    widest = max(int(w.shape[0]) for w in packed_params[::2])
    vmem_needed = (2 * (in_dim * tb * x.dtype.itemsize + fused_out * tb * 4)
                   + (1 if single_buffer_weights else 2) * weight_bytes
                   + 2 * widest * tb * 4)
    vmem_limit = int(min(max(2 * vmem_needed, 32 * 1024 * 1024),
                         64 * 1024 * 1024))

    x_spec = pl.BlockSpec((in_dim, tb), lambda i: (0, i))
    # Weights/biases: constant index_map -> fetched once, VMEM-resident across
    # grid steps; Buffered(1) drops the default 2x double-buffer for them.
    if single_buffer_weights:
        param_specs = [
            pl.BlockSpec(p.shape, lambda i: (0, 0), pipeline_mode=pl.Buffered(1))
            for p in packed_params
        ]
    else:
        param_specs = [pl.BlockSpec(p.shape, lambda i: (0, 0))
                       for p in packed_params]
    out_spec = pl.BlockSpec((fused_out, tb), lambda i: (0, i))

    slab = pl.pallas_call(
        functools.partial(_gaussian_mlp_kernel, out_dim=output_dim, fused=fused),
        out_shape=jax.ShapeDtypeStruct((fused_out, batch), jnp.float32),
        grid=grid,
        in_specs=[x_spec] + param_specs,
        out_specs=out_spec,
        compiler_params=pltpu.CompilerParams(
            dimension_semantics=("parallel",),   # v7x: shard batch steps over both TCs
            vmem_limit_bytes=vmem_limit,
        ),
        cost_estimate=cost,
    )(xt, *packed_params)

    mu = slab[:output_dim, :].T
    var = slab[output_dim:, :].T                  # softplus(logvar)
    return mu, var


def gaussian_mlp(x, mu_params, logvar_params, *, block_batch=2048,
                 param_dtype=jnp.float32):
    """Convenience one-shot wrapper. In production, call
    pack_gaussian_mlp_params once at init and reuse gaussian_mlp_forward."""
    packed, output_dim, fused = pack_gaussian_mlp_params(
        mu_params, logvar_params, param_dtype=param_dtype)
    return gaussian_mlp_forward(x, packed, output_dim=output_dim, fused=fused,
                                block_batch=block_batch)


# ---------------------------------------------------------------------------
# Deterministic init + self-check
# ---------------------------------------------------------------------------
def _init_mlp_params(key, input_dim, hidden_dims, output_dim):
    """MLP params in PyTorch layout: weights (out, in), biases (out, 1)."""
    dims = [input_dim] + list(hidden_dims) + [output_dim]
    params = []
    for i in range(len(dims) - 1):
        key, kw, kb = jax.random.split(key, 3)
        bound = 1.0 / jnp.sqrt(dims[i])
        w = jax.random.uniform(kw, (dims[i + 1], dims[i]), jnp.float32, -bound, bound)
        b = jax.random.uniform(kb, (dims[i + 1], 1), jnp.float32, -bound, bound)
        params += [w, b]
    return tuple(params), key


if __name__ == "__main__":
    def ref_mlp(x, params):
        h = x
        n = len(params) // 2
        for layer in range(n):
            w, b = params[2 * layer], params[2 * layer + 1]
            h = jnp.dot(h, w.T, precision=lax.Precision.HIGHEST) + b.reshape(1, -1)
            if layer < n - 1:
                h = jnp.maximum(h, 0.0)
        return h

    def run_case(key, batch, input_dim, hidden_dims, output_dim):
        key, kx = jax.random.split(key)
        x = jax.random.normal(kx, (batch, input_dim), jnp.float32)
        mu_params, key = _init_mlp_params(key, input_dim, hidden_dims, output_dim)
        lv_params, key = _init_mlp_params(key, input_dim, hidden_dims, output_dim)

        # Pack ONCE, outside the jitted forward (fusion decided here).
        packed, out_dim, fused = pack_gaussian_mlp_params(mu_params, lv_params)

        def make_fwd(single_buffer_weights):
            return jax.jit(functools.partial(
                gaussian_mlp_forward, output_dim=out_dim, fused=fused,
                block_batch=2048, single_buffer_weights=single_buffer_weights))

        try:
            mu, var = make_fwd(True)(x, packed)
        except Exception:
            # Fallback for jax builds without BlockSpec pipeline_mode/Buffered(1).
            mu, var = make_fwd(False)(x, packed)
        jax.block_until_ready((mu, var))

        mu_ref = ref_mlp(x, mu_params)
        var_ref = jax.nn.softplus(ref_mlp(x, lv_params))
        assert mu.shape == (batch, output_dim) and var.shape == (batch, output_dim)
        assert jnp.allclose(mu, mu_ref, atol=1e-4, rtol=1e-4), "mu mismatch"
        assert jnp.allclose(var, var_ref, atol=1e-4, rtol=1e-4), "softplus(logvar) mismatch"
        return key

    key = jax.random.PRNGKey(0)
    # Case 1: narrow widths -> fused (block-diagonal) chain, single batch block.
    key = run_case(key, batch=8, input_dim=16, hidden_dims=(32, 32), output_dim=8)
    # Case 2: hidden width >= 128 -> un-fused branches, 2-step batch grid (tb=256).
    key = run_case(key, batch=512, input_dim=16, hidden_dims=(128, 128), output_dim=8)

    print("KERNEL_OK")
</pallas_src>

<mosaic_0001>
module attributes {stable_mosaic.version = 11 : i64} {
  func.func @_gaussian_mlp_kernel(%arg0: i32, %arg1: memref<16x8xf32, #tpu.memory_space<vmem>>, %arg2: memref<64x16xf32, #tpu.memory_space<vmem>>, %arg3: memref<64x1xf32, #tpu.memory_space<vmem>>, %arg4: memref<64x64xf32, #tpu.memory_space<vmem>>, %arg5: memref<64x1xf32, #tpu.memory_space<vmem>>, %arg6: memref<16x64xf32, #tpu.memory_space<vmem>>, %arg7: memref<16x1xf32, #tpu.memory_space<vmem>>, %arg8: memref<16x8xf32, #tpu.memory_space<vmem>>) attributes {dimension_semantics = [#tpu.dimension_semantics<parallel>], iteration_bounds = array<i64: 1>, scalar_prefetch = 0 : i64, scratch_operands = 0 : i64, tpu.core_type = #tpu.core_type<tc>, window_params = [{transform_indices = @transform_0, window_bounds = array<i64: 16, 8>}, {pipeline_mode = #tpu.pipeline_mode<synchronous>, transform_indices = @transform_1, window_bounds = array<i64: 64, 16>}, {pipeline_mode = #tpu.pipeline_mode<synchronous>, transform_indices = @transform_2, window_bounds = array<i64: 64, 1>}, {pipeline_mode = #tpu.pipeline_mode<synchronous>, transform_indices = @transform_3, window_bounds = array<i64: 64, 64>}, {pipeline_mode = #tpu.pipeline_mode<synchronous>, transform_indices = @transform_4, window_bounds = array<i64: 64, 1>}, {pipeline_mode = #tpu.pipeline_mode<synchronous>, transform_indices = @transform_5, window_bounds = array<i64: 16, 64>}, {pipeline_mode = #tpu.pipeline_mode<synchronous>, transform_indices = @transform_6, window_bounds = array<i64: 16, 1>}, {transform_indices = @transform_7, window_bounds = array<i64: 16, 8>}]} {
    %c0 = arith.constant 0 : index
    %c0_0 = arith.constant 0 : index
    %0 = vector.load %arg1[%c0, %c0_0] : memref<16x8xf32, #tpu.memory_space<vmem>>, vector<16x8xf32>
    %c0_1 = arith.constant 0 : index
    %c0_2 = arith.constant 0 : index
    %1 = vector.load %arg2[%c0_1, %c0_2] : memref<64x16xf32, #tpu.memory_space<vmem>>, vector<64x16xf32>
    %c0_3 = arith.constant 0 : index
    %c0_4 = arith.constant 0 : index
    %2 = vector.load %arg3[%c0_3, %c0_4] : memref<64x1xf32, #tpu.memory_space<vmem>>, vector<64x1xf32>
    %cst = arith.constant dense<0.000000e+00> : vector<64x8xf32>
    %3 = tpu.matmul %1, %0, %cst {dimension_numbers = #tpu.dot_dimension_numbers<[1], [0], [0], [1], [0, 0, 1, 1], [], []>} : vector<64x16xf32>, vector<16x8xf32>, vector<64x8xf32> -> vector<64x8xf32>
    %4 = vector.broadcast %2 : vector<64x1xf32> to vector<64x8xf32>
    %5 = arith.addf %3, %4 : vector<64x8xf32>
    %cst_5 = arith.constant 0.000000e+00 : f32
    %6 = vector.broadcast %cst_5 : f32 to vector<64x8xf32>
    %7 = arith.maximumf %5, %6 : vector<64x8xf32>
    %c0_6 = arith.constant 0 : index
    %c0_7 = arith.constant 0 : index
    %8 = vector.load %arg4[%c0_6, %c0_7] : memref<64x64xf32, #tpu.memory_space<vmem>>, vector<64x64xf32>
    %c0_8 = arith.constant 0 : index
    %c0_9 = arith.constant 0 : index
    %9 = vector.load %arg5[%c0_8, %c0_9] : memref<64x1xf32, #tpu.memory_space<vmem>>, vector<64x1xf32>
    %cst_10 = arith.constant dense<0.000000e+00> : vector<64x8xf32>
    %10 = tpu.matmul %8, %7, %cst_10 {dimension_numbers = #tpu.dot_dimension_numbers<[1], [0], [0], [1], [0, 0, 1, 1], [], []>} : vector<64x64xf32>, vector<64x8xf32>, vector<64x8xf32> -> vector<64x8xf32>
    %11 = vector.broadcast %9 : vector<64x1xf32> to vector<64x8xf32>
    %12 = arith.addf %10, %11 : vector<64x8xf32>
    %cst_11 = arith.constant 0.000000e+00 : f32
    %13 = vector.broadcast %cst_11 : f32 to vector<64x8xf32>
    %14 = arith.maximumf %12, %13 : vector<64x8xf32>
    %c0_12 = arith.constant 0 : index
    %c0_13 = arith.constant 0 : index
    %15 = vector.load %arg6[%c0_12, %c0_13] : memref<16x64xf32, #tpu.memory_space<vmem>>, vector<16x64xf32>
    %c0_14 = arith.constant 0 : index
    %c0_15 = arith.constant 0 : index
    %16 = vector.load %arg7[%c0_14, %c0_15] : memref<16x1xf32, #tpu.memory_space<vmem>>, vector<16x1xf32>
    %cst_16 = arith.constant dense<0.000000e+00> : vector<16x8xf32>
    %17 = tpu.matmul %15, %14, %cst_16 {dimension_numbers = #tpu.dot_dimension_numbers<[1], [0], [0], [1], [0, 0, 1, 1], [], []>} : vector<16x64xf32>, vector<64x8xf32>, vector<16x8xf32> -> vector<16x8xf32>
    %18 = vector.broadcast %16 : vector<16x1xf32> to vector<16x8xf32>
    %19 = arith.addf %17, %18 : vector<16x8xf32>
    %20 = vector.extract_strided_slice %19 {offsets = [0, 0], sizes = [8, 8], strides = [1, 1]} : vector<16x8xf32> to vector<8x8xf32>
    %21 = vector.extract_strided_slice %19 {offsets = [8, 0], sizes = [8, 8], strides = [1, 1]} : vector<16x8xf32> to vector<8x8xf32>
    %cst_17 = arith.constant 2.000000e+01 : f32
    %22 = vector.broadcast %cst_17 : f32 to vector<8x8xf32>
    %23 = arith.cmpf ogt, %21, %22 : vector<8x8xf32>
    %cst_18 = arith.constant 2.000000e+01 : f32
    %24 = vector.broadcast %cst_18 : f32 to vector<8x8xf32>
    %25 = arith.minimumf %21, %24 : vector<8x8xf32>
    %26 = math.exp %25 : vector<8x8xf32>
    %27 = math.log1p %26 : vector<8x8xf32>
    %28 = arith.select %23, %21, %27 : vector<8x8xi1>, vector<8x8xf32>
    %c0_19 = arith.constant 0 : index
    %c0_20 = arith.constant 0 : index
    %29 = vector.load %arg8[%c0_19, %c0_20] : memref<16x8xf32, #tpu.memory_space<vmem>>, vector<8x8xf32>
    tpu.vector_store %arg8[%c0_19, %c0_20], %20 {strides = array<i32>} : memref<16x8xf32, #tpu.memory_space<vmem>>, vector<8x8xf32>,
    %c8 = arith.constant 8 : index
    %c0_21 = arith.constant 0 : index
    %30 = vector.load %arg8[%c8, %c0_21] : memref<16x8xf32, #tpu.memory_space<vmem>>, vector<8x8xf32>
    tpu.vector_store %arg8[%c8, %c0_21], %28 {strides = array<i32>} : memref<16x8xf32, #tpu.memory_space<vmem>>, vector<8x8xf32>,
    return
  }
  func.func @transform_0(%arg0: i32) -> (i32, i32) {
    %c0_i32 = arith.constant 0 : i32
    %c0_i32_0 = arith.constant 0 : i32
    return %c0_i32, %arg0 : i32, i32
  }
  func.func @transform_1(%arg0: i32) -> (i32, i32) {
    %c0_i32 = arith.constant 0 : i32
    %c0_i32_0 = arith.constant 0 : i32
    %c0_i32_1 = arith.constant 0 : i32
    return %c0_i32, %c0_i32_0 : i32, i32
  }
  func.func @transform_2(%arg0: i32) -> (i32, i32) {
    %c0_i32 = arith.constant 0 : i32
    %c0_i32_0 = arith.constant 0 : i32
    %c0_i32_1 = arith.constant 0 : i32
    return %c0_i32, %c0_i32_0 : i32, i32
  }
  func.func @transform_3(%arg0: i32) -> (i32, i32) {
    %c0_i32 = arith.constant 0 : i32
    %c0_i32_0 = arith.constant 0 : i32
    %c0_i32_1 = arith.constant 0 : i32
    return %c0_i32, %c0_i32_0 : i32, i32
  }
  func.func @transform_4(%arg0: i32) -> (i32, i32) {
    %c0_i32 = arith.constant 0 : i32
    %c0_i32_0 = arith.constant 0 : i32
    %c0_i32_1 = arith.constant 0 : i32
    return %c0_i32, %c0_i32_0 : i32, i32
  }
  func.func @transform_5(%arg0: i32) -> (i32, i32) {
    %c0_i32 = arith.constant 0 : i32
    %c0_i32_0 = arith.constant 0 : i32
    %c0_i32_1 = arith.constant 0 : i32
    return %c0_i32, %c0_i32_0 : i32, i32
  }
  func.func @transform_6(%arg0: i32) -> (i32, i32) {
    %c0_i32 = arith.constant 0 : i32
    %c0_i32_0 = arith.constant 0 : i32
    %c0_i32_1 = arith.constant 0 : i32
    return %c0_i32, %c0_i32_0 : i32, i32
  }
  func.func @transform_7(%arg0: i32) -> (i32, i32) {
    %c0_i32 = arith.constant 0 : i32
    %c0_i32_0 = arith.constant 0 : i32
    return %c0_i32, %arg0 : i32, i32
  }
}

module attributes {stable_mosaic.version = 11 : i64} {
  func.func @_gaussian_mlp_kernel(%arg0: i32, %arg1: memref<16x8xf32, #tpu.memory_space<vmem>>, %arg2: memref<64x16xf32, #tpu.memory_space<vmem>>, %arg3: memref<64x1xf32, #tpu.memory_space<vmem>>, %arg4: memref<64x64xf32, #tpu.memory_space<vmem>>, %arg5: memref<64x1xf32, #tpu.memory_space<vmem>>, %arg6: memref<16x64xf32, #tpu.memory_space<vmem>>, %arg7: memref<16x1xf32, #tpu.memory_space<vmem>>, %arg8: memref<16x8xf32, #tpu.memory_space<vmem>>) attributes {dimension_semantics = [#tpu.dimension_semantics<parallel>], iteration_bounds = array<i64: 1>, scalar_prefetch = 0 : i64, scratch_operands = 0 : i64, tpu.core_type = #tpu.core_type<tc>, window_params = [{transform_indices = @transform_0, window_bounds = array<i64: 16, 8>}, {pipeline_mode = #tpu.pipeline_mode<synchronous>, transform_indices = @transform_1, window_bounds = array<i64: 64, 16>}, {pipeline_mode = #tpu.pipeline_mode<synchronous>, transform_indices = @transform_2, window_bounds = array<i64: 64, 1>}, {pipeline_mode = #tpu.pipeline_mode<synchronous>, transform_indices = @transform_3, window_bounds = array<i64: 64, 64>}, {pipeline_mode = #tpu.pipeline_mode<synchronous>, transform_indices = @transform_4, window_bounds = array<i64: 64, 1>}, {pipeline_mode = #tpu.pipeline_mode<synchronous>, transform_indices = @transform_5, window_bounds = array<i64: 16, 64>}, {pipeline_mode = #tpu.pipeline_mode<synchronous>, transform_indices = @transform_6, window_bounds = array<i64: 16, 1>}, {transform_indices = @transform_7, window_bounds = array<i64: 16, 8>}]} {
    %c0 = arith.constant 0 : index
    %c0_0 = arith.constant 0 : index
    %0 = vector.load %arg1[%c0, %c0_0] : memref<16x8xf32, #tpu.memory_space<vmem>>, vector<16x8xf32>
    %c0_1 = arith.constant 0 : index
    %c0_2 = arith.constant 0 : index
    %1 = vector.load %arg2[%c0_1, %c0_2] : memref<64x16xf32, #tpu.memory_space<vmem>>, vector<64x16xf32>
    %c0_3 = arith.constant 0 : index
    %c0_4 = arith.constant 0 : index
    %2 = vector.load %arg3[%c0_3, %c0_4] : memref<64x1xf32, #tpu.memory_space<vmem>>, vector<64x1xf32>
    %cst = arith.constant dense<0.000000e+00> : vector<64x8xf32>
    %3 = tpu.matmul %1, %0, %cst {dimension_numbers = #tpu.dot_dimension_numbers<[1], [0], [0], [1], [0, 0, 1, 1], [], []>} : vector<64x16xf32>, vector<16x8xf32>, vector<64x8xf32> -> vector<64x8xf32>
    %4 = vector.broadcast %2 : vector<64x1xf32> to vector<64x8xf32>
    %5 = arith.addf %3, %4 : vector<64x8xf32>
    %cst_5 = arith.constant 0.000000e+00 : f32
    %6 = vector.broadcast %cst_5 : f32 to vector<64x8xf32>
    %7 = arith.maximumf %5, %6 : vector<64x8xf32>
    %c0_6 = arith.constant 0 : index
    %c0_7 = arith.constant 0 : index
    %8 = vector.load %arg4[%c0_6, %c0_7] : memref<64x64xf32, #tpu.memory_space<vmem>>, vector<64x64xf32>
    %c0_8 = arith.constant 0 : index
    %c0_9 = arith.constant 0 : index
    %9 = vector.load %arg5[%c0_8, %c0_9] : memref<64x1xf32, #tpu.memory_space<vmem>>, vector<64x1xf32>
    %cst_10 = arith.constant dense<0.000000e+00> : vector<64x8xf32>
    %10 = tpu.matmul %8, %7, %cst_10 {dimension_numbers = #tpu.dot_dimension_numbers<[1], [0], [0], [1], [0, 0, 1, 1], [], []>} : vector<64x64xf32>, vector<64x8xf32>, vector<64x8xf32> -> vector<64x8xf32>
    %11 = vector.broadcast %9 : vector<64x1xf32> to vector<64x8xf32>
    %12 = arith.addf %10, %11 : vector<64x8xf32>
    %cst_11 = arith.constant 0.000000e+00 : f32
    %13 = vector.broadcast %cst_11 : f32 to vector<64x8xf32>
    %14 = arith.maximumf %12, %13 : vector<64x8xf32>
    %c0_12 = arith.constant 0 : index
    %c0_13 = arith.constant 0 : index
    %15 = vector.load %arg6[%c0_12, %c0_13] : memref<16x64xf32, #tpu.memory_space<vmem>>, vector<16x64xf32>
    %c0_14 = arith.constant 0 : index
    %c0_15 = arith.constant 0 : index
    %16 = vector.load %arg7[%c0_14, %c0_15] : memref<16x1xf32, #tpu.memory_space<vmem>>, vector<16x1xf32>
    %cst_16 = arith.constant dense<0.000000e+00> : vector<16x8xf32>
    %17 = tpu.matmul %15, %14, %cst_16 {dimension_numbers = #tpu.dot_dimension_numbers<[1], [0], [0], [1], [0, 0, 1, 1], [], []>} : vector<16x64xf32>, vector<64x8xf32>, vector<16x8xf32> -> vector<16x8xf32>
    %18 = vector.broadcast %16 : vector<16x1xf32> to vector<16x8xf32>
    %19 = arith.addf %17, %18 : vector<16x8xf32>
    %20 = vector.extract_strided_slice %19 {offsets = [0, 0], sizes = [8, 8], strides = [1, 1]} : vector<16x8xf32> to vector<8x8xf32>
    %21 = vector.extract_strided_slice %19 {offsets = [8, 0], sizes = [8, 8], strides = [1, 1]} : vector<16x8xf32> to vector<8x8xf32>
    %cst_17 = arith.constant 2.000000e+01 : f32
    %22 = vector.broadcast %cst_17 : f32 to vector<8x8xf32>
    %23 = arith.cmpf ogt, %21, %22 : vector<8x8xf32>
    %cst_18 = arith.constant 2.000000e+01 : f32
    %24 = vector.broadcast %cst_18 : f32 to vector<8x8xf32>
    %25 = arith.minimumf %21, %24 : vector<8x8xf32>
    %26 = math.exp %25 : vector<8x8xf32>
    %27 = math.log1p %26 : vector<8x8xf32>
    %28 = arith.select %23, %21, %27 : vector<8x8xi1>, vector<8x8xf32>
    %c0_19 = arith.constant 0 : index
    %c0_20 = arith.constant 0 : index
    %29 = vector.load %arg8[%c0_19, %c0_20] : memref<16x8xf32, #tpu.memory_space<vmem>>, vector<8x8xf32>
    tpu.vector_store %arg8[%c0_19, %c0_20], %20 {strides = array<i32>} : memref<16x8xf32, #tpu.memory_space<vmem>>, vector<8x8xf32>,
    %c8 = arith.constant 8 : index
    %c0_21 = arith.constant 0 : index
    %30 = vector.load %arg8[%c8, %c0_21] : memref<16x8xf32, #tpu.memory_space<vmem>>, vector<8x8xf32>
    tpu.vector_store %arg8[%c8, %c0_21], %28 {strides = array<i32>} : memref<16x8xf32, #tpu.memory_space<vmem>>, vector<8x8xf32>,
    return
  }
  func.func @transform_0(%arg0: i32) -> (i32, i32) {
    %c0_i32 = arith.constant 0 : i32
    %c0_i32_0 = arith.constant 0 : i32
    return %c0_i32, %arg0 : i32, i32
  }
  func.func @transform_1(%arg0: i32) -> (i32, i32) {
    %c0_i32 = arith.constant 0 : i32
    %c0_i32_0 = arith.constant 0 : i32
    %c0_i32_1 = arith.constant 0 : i32
    return %c0_i32, %c0_i32_0 : i32, i32
  }
  func.func @transform_2(%arg0: i32) -> (i32, i32) {
    %c0_i32 = arith.constant 0 : i32
    %c0_i32_0 = arith.constant 0 : i32
    %c0_i32_1 = arith.constant 0 : i32
    return %c0_i32, %c0_i32_0 : i32, i32
  }
  func.func @transform_3(%arg0: i32) -> (i32, i32) {
    %c0_i32 = arith.constant 0 : i32
    %c0_i32_0 = arith.constant 0 : i32
    %c0_i32_1 = arith.constant 0 : i32
    return %c0_i32, %c0_i32_0 : i32, i32
  }
  func.func @transform_4(%arg0: i32) -> (i32, i32) {
    %c0_i32 = arith.constant 0 : i32
    %c0_i32_0 = arith.constant 0 : i32
    %c0_i32_1 = arith.constant 0 : i32
    return %c0_i32, %c0_i32_0 : i32, i32
  }
  func.func @transform_5(%arg0: i32) -> (i32, i32) {
    %c0_i32 = arith.constant 0 : i32
    %c0_i32_0 = arith.constant 0 : i32
    %c0_i32_1 = arith.constant 0 : i32
    return %c0_i32, %c0_i32_0 : i32, i32
  }
  func.func @transform_6(%arg0: i32) -> (i32, i32) {
    %c0_i32 = arith.constant 0 : i32
    %c0_i32_0 = arith.constant 0 : i32
    %c0_i32_1 = arith.constant 0 : i32
    return %c0_i32, %c0_i32_0 : i32, i32
  }
  func.func @transform_7(%arg0: i32) -> (i32, i32) {
    %c0_i32 = arith.constant 0 : i32
    %c0_i32_0 = arith.constant 0 : i32
    return %c0_i32, %arg0 : i32, i32
  }
}

</mosaic_0001>

<llo_original>
// kernel: gaussian_mlp_forward.1
$region0: #{gaussian_mlp_forward.1}
  #allocation0 [shape = 'u32[]', space=smem, size = 0x4, offset = 0x4, fixed_abs, tag = 'smem constant byte address 0x4 - core index']
  #allocation1 [shape = 'u32[144,128]{1,0:T(1,128)}', space=vmem, size = 0x12000, scoped, tag = 'internal scratch']
  %s0 = inlined_call_operand.vmem [shape: f32[16,8], index: 0, kind: input, shape index: {}]
  %s1 = inlined_call_operand.vmem [shape: f32[64,16], index: 1, kind: input, shape index: {}]
  %s2 = inlined_call_operand.vmem [shape: f32[64,1], index: 2, kind: input, shape index: {}]
  %s3 = inlined_call_operand.vmem [shape: f32[64,64], index: 3, kind: input, shape index: {}]
  %s4 = inlined_call_operand.vmem [shape: f32[64,1], index: 4, kind: input, shape index: {}]
  %s5 = inlined_call_operand.vmem [shape: f32[16,64], index: 5, kind: input, shape index: {}]
  %s6 = inlined_call_operand.vmem [shape: f32[16,1], index: 6, kind: input, shape index: {}]
  %s7 = inlined_call_operand.vmem [shape: f32[16,8], index: 7, kind: output, shape index: {}]
  %s8 = sld [smem:[#allocation0]]
  $region38: #{gaussian_mlp_forward.1} parent=0
    _
  %s10 = ssub.s32 1, %s8
  %s11 = scalar_select 0, %s10, %s8
  // Predicated region
  $region2: #{gaussian_mlp_forward.1} parent=0 // pred_check
    _
  $region3: #{gaussian_mlp_forward.1} parent=0 // pred_check_branch
    %13 = sbr.rel (0) target = $region5
  $region4: #{gaussian_mlp_forward.1} parent=0 // pred_region
    _
  $region5: #{gaussian_mlp_forward.1} parent=0 // pred_fallthru
    _
  // Predicated region
  $region6: #{gaussian_mlp_forward.1} parent=0 // pred_check
    _
  $region7: #{gaussian_mlp_forward.1} parent=0 // pred_check_branch
    %15 = sbr.rel (0) target = $region9
  $region8: #{gaussian_mlp_forward.1} parent=0 // pred_region
    _
  $region9: #{gaussian_mlp_forward.1} parent=0 // pred_fallthru
    _
  // Predicated region
  $region10: #{gaussian_mlp_forward.1} parent=0 // pred_check
    _
  $region11: #{gaussian_mlp_forward.1} parent=0 // pred_check_branch
    %17 = sbr.rel (0) target = $region13
  $region12: #{gaussian_mlp_forward.1} parent=0 // pred_region
    _
  $region13: #{gaussian_mlp_forward.1} parent=0 // pred_fallthru
    _
  // Predicated region
  $region14: #{gaussian_mlp_forward.1} parent=0 // pred_check
    _
  $region15: #{gaussian_mlp_forward.1} parent=0 // pred_check_branch
    %19 = sbr.rel (0) target = $region17
  $region16: #{gaussian_mlp_forward.1} parent=0 // pred_region
    _
  $region17: #{gaussian_mlp_forward.1} parent=0 // pred_fallthru
    _
  // Predicated region
  $region18: #{gaussian_mlp_forward.1} parent=0 // pred_check
    _
  $region19: #{gaussian_mlp_forward.1} parent=0 // pred_check_branch
    %21 = sbr.rel (0) target = $region21
  $region20: #{gaussian_mlp_forward.1} parent=0 // pred_region
    _
  $region21: #{gaussian_mlp_forward.1} parent=0 // pred_fallthru
    _
  // Predicated region
  $region22: #{gaussian_mlp_forward.1} parent=0 // pred_check
    _
  $region23: #{gaussian_mlp_forward.1} parent=0 // pred_check_branch
    %23 = sbr.rel (0) target = $region25
  $region24: #{gaussian_mlp_forward.1} parent=0 // pred_region
    _
  $region25: #{gaussian_mlp_forward.1} parent=0 // pred_fallthru
    _
  // Predicated region
  $region26: #{gaussian_mlp_forward.1} parent=0 // pred_check
    _
  $region27: #{gaussian_mlp_forward.1} parent=0 // pred_check_branch
    %25 = sbr.rel (0) target = $region29
  $region28: #{gaussian_mlp_forward.1} parent=0 // pred_region
    _
  $region29: #{gaussian_mlp_forward.1} parent=0 // pred_fallthru
    _
  %v26 = vld [vmem:[%s0] sm:$0xff]
  %v27 = vld [vmem:[%s0 + $0x8] sm:$0xff]
  %v28 = vld [vmem:[%s1] sm:$0xff]
  %v29 = vld [vmem:[%s1 + $0x8] sm:$0xff]
  %v30 = vld [vmem:[%s1 + $0x10] sm:$0xff]
  %v31 = vld [vmem:[%s1 + $0x18] sm:$0xff]
  %v32 = vld [vmem:[%s1 + $0x20] sm:$0xff]
  %v33 = vld [vmem:[%s1 + $0x28] sm:$0xff]
  %v34 = vld [vmem:[%s1 + $0x30] sm:$0xff]
  %v35 = vld [vmem:[%s1 + $0x38] sm:$0xff]
  %v36 = vld [vmem:[%s2] sm:$0xff]
  %v37 = vld [vmem:[%s2 + $0x8] sm:$0xff]
  %v38 = vld [vmem:[%s2 + $0x10] sm:$0xff]
  %v39 = vld [vmem:[%s2 + $0x18] sm:$0xff]
  %v40 = vld [vmem:[%s2 + $0x20] sm:$0xff]
  %v41 = vld [vmem:[%s2 + $0x28] sm:$0xff]
  %v42 = vld [vmem:[%s2 + $0x30] sm:$0xff]
  %v43 = vld [vmem:[%s2 + $0x38] sm:$0xff]
  %45 = vset.pattern.permute.xlu0 0
  %46 = vperm.xlu0 %45, %v36
  %v47 = vpop.permute.xlu0 %46
  %50 = vset.pattern.permute.xlu0 0
  %51 = vperm.xlu0 %50, %v37
  %v52 = vpop.permute.xlu0 %51
  %55 = vset.pattern.permute.xlu0 0
  %56 = vperm.xlu0 %55, %v38
  %v57 = vpop.permute.xlu0 %56
  %60 = vset.pattern.permute.xlu0 0
  %61 = vperm.xlu0 %60, %v39
  %v62 = vpop.permute.xlu0 %61
  %65 = vset.pattern.permute.xlu0 0
  %66 = vperm.xlu0 %65, %v40
  %v67 = vpop.permute.xlu0 %66
  %70 = vset.pattern.permute.xlu0 0
  %71 = vperm.xlu0 %70, %v41
  %v72 = vpop.permute.xlu0 %71
  %75 = vset.pattern.permute.xlu0 0
  %76 = vperm.xlu0 %75, %v42
  %v77 = vpop.permute.xlu0 %76
  %80 = vset.pattern.permute.xlu0 0
  %81 = vperm.xlu0 %80, %v43
  %v82 = vpop.permute.xlu0 %81
  %vm84 = vcmask 130048
  %v86 = vsel %vm84, %v28, 0
  %v89 = vsel %vm84, %v29, 0
  %v92 = vsel %vm84, %v30, 0
  %v95 = vsel %vm84, %v31, 0
  %v98 = vsel %vm84, %v32, 0
  %v101 = vsel %vm84, %v33, 0
  %v104 = vsel %vm84, %v34, 0
  %v107 = vsel %vm84, %v35, 0
  %109 = vmatprep.subr.mxu0 0.0
  %110 = vmatpush1.msra.mxu0 0.0
  %111 = vmatprep.subr.mxu0 0.0
  %112 = vmatpush1.msra.mxu0 0.0
  %113 = vmatprep.subr.mxu0 0.0
  %114 = vmatpush1.msra.mxu0 0.0
  %115 = vmatprep.subr.mxu0 0.0
  %116 = vmatpush1.msra.mxu0 0.0
  %117 = vmatprep.subr.mxu0 0.0
  %118 = vmatpush1.msra.mxu0 0.0
  %119 = vmatprep.subr.mxu0 0.0
  %120 = vmatpush1.msra.mxu0 0.0
  %121 = vmatprep.subr.mxu0 0.0
  %122 = vmatpush1.msra.mxu0 0.0
  %123 = vmatprep.subr.mxu0 0.0
  %124 = vmatpush1.msra.mxu0 0.0
  %125 = vmatprep.subr.mxu0 0.0
  %126 = vmatpush1.msra.mxu0 0.0
  %127 = vmatprep.subr.mxu0 0.0
  %128 = vmatpush1.msra.mxu0 0.0
  %129 = vmatprep.subr.mxu0 0.0
  %130 = vmatpush1.msra.mxu0 0.0
  %131 = vmatprep.subr.mxu0 0.0
  %132 = vmatpush1.msra.mxu0 0.0
  %133 = vmatprep.subr.mxu0 0.0
  %134 = vmatpush1.msra.mxu0 0.0
  %135 = vmatprep.subr.mxu0 0.0
  %136 = vmatpush1.msra.mxu0 0.0
  %137 = vmatprep.subr.mxu0 0.0
  %138 = vmatpush1.msra.mxu0 %v27
  %139 = vmatprep.subr.mxu0 0.0
  %140 = vmatpush1.msra.mxu0 %v26
  %141 = vmatprep.subr.mxu0 0.0
  %142 = vmatpush2.msra.mxu0 0.0
  %143 = vmatprep.subr.mxu0 0.0
  %144 = vmatpush2.msra.mxu0 0.0
  %145 = vmatprep.subr.mxu0 0.0
  %146 = vmatpush2.msra.mxu0 0.0
  %147 = vmatprep.subr.mxu0 0.0
  %148 = vmatpush2.msra.mxu0 0.0
  %149 = vmatprep.subr.mxu0 0.0
  %150 = vmatpush2.msra.mxu0 0.0
  %151 = vmatprep.subr.mxu0 0.0
  %152 = vmatpush2.msra.mxu0 0.0
  %153 = vmatprep.subr.mxu0 0.0
  %154 = vmatpush2.msra.mxu0 0.0
  %155 = vmatprep.subr.mxu0 0.0
  %156 = vmatpush2.msra.mxu0 0.0
  %157 = vmatprep.subr.mxu0 0.0
  %158 = vmatpush2.msra.mxu0 0.0
  %159 = vmatprep.subr.mxu0 0.0
  %160 = vmatpush2.msra.mxu0 0.0
  %161 = vmatprep.subr.mxu0 0.0
  %162 = vmatpush2.msra.mxu0 0.0
  %163 = vmatprep.subr.mxu0 0.0
  %164 = vmatpush2.msra.mxu0 0.0
  %165 = vmatprep.subr.mxu0 0.0
  %166 = vmatpush2.msra.mxu0 0.0
  %167 = vmatprep.subr.mxu0 0.0
  %168 = vmatpush2.msra.mxu0 0.0
  %169 = vmatprep.subr.mxu0 0.0
  %170 = vmatpush2.msra.mxu0 0.0
  %171 = vmatprep.subr.mxu0 0.0
  %172 = vmatpush2.msra.mxu0 0.0
  %173 = vmatprep.mubr.f32.mxu0 0.0
  %174 = vmatmul.mubr.f32.gmra.mxu0 %v86
  %v175 = vpop.f32.mrf.mxu0
  %v176 = vadd.f32 %v47, %v175
  %v177 = vpop.f32.mrf.mxu0
  %178 = vmatprep.mubr.f32.mxu0 0.0
  %179 = vmatmul.mubr.f32.gmra.mxu0 %v89
  %v180 = vpop.f32.mrf.mxu0
  %v181 = vadd.f32 %v52, %v180
  %v182 = vpop.f32.mrf.mxu0
  %183 = vmatprep.mubr.f32.mxu0 0.0
  %184 = vmatmul.mubr.f32.gmra.mxu0 %v92
  %v185 = vpop.f32.mrf.mxu0
  %v186 = vadd.f32 %v57, %v185
  %v187 = vpop.f32.mrf.mxu0
  %188 = vmatprep.mubr.f32.mxu0 0.0
  %189 = vmatmul.mubr.f32.gmra.mxu0 %v95
  %v190 = vpop.f32.mrf.mxu0
  %v191 = vadd.f32 %v62, %v190
  %v192 = vpop.f32.mrf.mxu0
  %193 = vmatprep.mubr.f32.mxu0 0.0
  %194 = vmatmul.mubr.f32.gmra.mxu0 %v98
  %v195 = vpop.f32.mrf.mxu0
  %v196 = vadd.f32 %v67, %v195
  %v197 = vpop.f32.mrf.mxu0
  %198 = vmatprep.mubr.f32.mxu0 0.0
  %199 = vmatmul.mubr.f32.gmra.mxu0 %v101
  %v200 = vpop.f32.mrf.mxu0
  %v201 = vadd.f32 %v72, %v200
  %v202 = vpop.f32.mrf.mxu0
  %203 = vmatprep.mubr.f32.mxu0 0.0
  %204 = vmatmul.mubr.f32.gmra.mxu0 %v104
  %v205 = vpop.f32.mrf.mxu0
  %v206 = vadd.f32 %v77, %v205
  %v207 = vpop.f32.mrf.mxu0
  %208 = vmatprep.mubr.f32.mxu0 0.0
  %209 = vmatmul.mubr.f32.gmra.mxu0 %v107
  %v210 = vpop.f32.mrf.mxu0
  %v211 = vadd.f32 %v82, %v210
  %v212 = vpop.f32.mrf.mxu0
  %213 = vdwg.mxu0
  %v214 = vmax.f32 %v176, 0.0
  %v215 = vmax.f32 %v181, 0.0
  %v216 = vmax.f32 %v186, 0.0
  %v217 = vmax.f32 %v191, 0.0
  %v218 = vmax.f32 %v196, 0.0
  %v219 = vmax.f32 %v201, 0.0
  %v220 = vmax.f32 %v206, 0.0
  %v221 = vmax.f32 %v211, 0.0
  %v222 = vld [vmem:[%s3] sm:$0xff]
  %v223 = vld [vmem:[%s3 + $0x8] sm:$0xff]
  %v224 = vld [vmem:[%s3 + $0x10] sm:$0xff]
  %v225 = vld [vmem:[%s3 + $0x18] sm:$0xff]
  %v226 = vld [vmem:[%s3 + $0x20] sm:$0xff]
  %v227 = vld [vmem:[%s3 + $0x28] sm:$0xff]
  %v228 = vld [vmem:[%s3 + $0x30] sm:$0xff]
  %v229 = vld [vmem:[%s3 + $0x38] sm:$0xff]
  %v230 = vld [vmem:[%s4] sm:$0xff]
  %v231 = vld [vmem:[%s4 + $0x8] sm:$0xff]
  %v232 = vld [vmem:[%s4 + $0x10] sm:$0xff]
  %v233 = vld [vmem:[%s4 + $0x18] sm:$0xff]
  %v234 = vld [vmem:[%s4 + $0x20] sm:$0xff]
  %v235 = vld [vmem:[%s4 + $0x28] sm:$0xff]
  %v236 = vld [vmem:[%s4 + $0x30] sm:$0xff]
  %v237 = vld [vmem:[%s4 + $0x38] sm:$0xff]
  %239 = vset.pattern.permute.xlu0 0
  %240 = vperm.xlu0 %239, %v230
  %v241 = vpop.permute.xlu0 %240
  %244 = vset.pattern.permute.xlu0 0
  %245 = vperm.xlu0 %244, %v231
  %v246 = vpop.permute.xlu0 %245
  %249 = vset.pattern.permute.xlu0 0
  %250 = vperm.xlu0 %249, %v232
  %v251 = vpop.permute.xlu0 %250
  %254 = vset.pattern.permute.xlu0 0
  %255 = vperm.xlu0 %254, %v233
  %v256 = vpop.permute.xlu0 %255
  %259 = vset.pattern.permute.xlu0 0
  %260 = vperm.xlu0 %259, %v234
  %v261 = vpop.permute.xlu0 %260
  %264 = vset.pattern.permute.xlu0 0
  %265 = vperm.xlu0 %264, %v235
  %v266 = vpop.permute.xlu0 %265
  %269 = vset.pattern.permute.xlu0 0
  %270 = vperm.xlu0 %269, %v236
  %v271 = vpop.permute.xlu0 %270
  %274 = vset.pattern.permute.xlu0 0
  %275 = vperm.xlu0 %274, %v237
  %v276 = vpop.permute.xlu0 %275
  %vm278 = vcmask 523264
  %v280 = vsel %vm278, %v222, 0
  %v283 = vsel %vm278, %v223, 0
  %v286 = vsel %vm278, %v224, 0
  %v289 = vsel %vm278, %v225, 0
  %v292 = vsel %vm278, %v226, 0
  %v295 = vsel %vm278, %v227, 0
  %v298 = vsel %vm278, %v228, 0
  %v301 = vsel %vm278, %v229, 0
  %303 = vmatprep.subr.mxu0 0.0
  %304 = vmatpush1.msra.mxu0 0.0
  %305 = vmatprep.subr.mxu0 0.0
  %306 = vmatpush1.msra.mxu0 0.0
  %307 = vmatprep.subr.mxu0 0.0
  %308 = vmatpush1.msra.mxu0 0.0
  %309 = vmatprep.subr.mxu0 0.0
  %310 = vmatpush1.msra.mxu0 0.0
  %311 = vmatprep.subr.mxu0 0.0
  %312 = vmatpush1.msra.mxu0 0.0
  %313 = vmatprep.subr.mxu0 0.0
  %314 = vmatpush1.msra.mxu0 0.0
  %315 = vmatprep.subr.mxu0 0.0
  %316 = vmatpush1.msra.mxu0 0.0
  %317 = vmatprep.subr.mxu0 0.0
  %318 = vmatpush1.msra.mxu0 0.0
  %319 = vmatprep.subr.mxu0 0.0
  %320 = vmatpush1.msra.mxu0 %v221
  %321 = vmatprep.subr.mxu0 0.0
  %322 = vmatpush1.msra.mxu0 %v220
  %323 = vmatprep.subr.mxu0 0.0
  %324 = vmatpush1.msra.mxu0 %v219
  %325 = vmatprep.subr.mxu0 0.0
  %326 = vmatpush1.msra.mxu0 %v218
  %327 = vmatprep.subr.mxu0 0.0
  %328 = vmatpush1.msra.mxu0 %v217
  %329 = vmatprep.subr.mxu0 0.0
  %330 = vmatpush1.msra.mxu0 %v216
  %331 = vmatprep.subr.mxu0 0.0
  %332 = vmatpush1.msra.mxu0 %v215
  %333 = vmatprep.subr.mxu0 0.0
  %334 = vmatpush1.msra.mxu0 %v214
  %335 = vmatprep.subr.mxu0 0.0
  %336 = vmatpush2.msra.mxu0 0.0
  %337 = vmatprep.subr.mxu0 0.0
  %338 = vmatpush2.msra.mxu0 0.0
  %339 = vmatprep.subr.mxu0 0.0
  %340 = vmatpush2.msra.mxu0 0.0
  %341 = vmatprep.subr.mxu0 0.0
  %342 = vmatpush2.msra.mxu0 0.0
  %343 = vmatprep.subr.mxu0 0.0
  %344 = vmatpush2.msra.mxu0 0.0
  %345 = vmatprep.subr.mxu0 0.0
  %346 = vmatpush2.msra.mxu0 0.0
  %347 = vmatprep.subr.mxu0 0.0
  %348 = vmatpush2.msra.mxu0 0.0
  %349 = vmatprep.subr.mxu0 0.0
  %350 = vmatpush2.msra.mxu0 0.0
  %351 = vmatprep.subr.mxu0 0.0
  %352 = vmatpush2.msra.mxu0 0.0
  %353 = vmatprep.subr.mxu0 0.0
  %354 = vmatpush2.msra.mxu0 0.0
  %355 = vmatprep.subr.mxu0 0.0
  %356 = vmatpush2.msra.mxu0 0.0
  %357 = vmatprep.subr.mxu0 0.0
  %358 = vmatpush2.msra.mxu0 0.0
  %359 = vmatprep.subr.mxu0 0.0
  %360 = vmatpush2.msra.mxu0 0.0
  %361 = vmatprep.subr.mxu0 0.0
  %362 = vmatpush2.msra.mxu0 0.0
  %363 = vmatprep.subr.mxu0 0.0
  %364 = vmatpush2.msra.mxu0 0.0
  %365 = vmatprep.subr.mxu0 0.0
  %366 = vmatpush2.msra.mxu0 0.0
  %367 = vmatprep.mubr.f32.mxu0 0.0
  %368 = vmatmul.mubr.f32.gmra.mxu0 %v280
  %v369 = vpop.f32.mrf.mxu0
  %v370 = vadd.f32 %v241, %v369
  %v371 = vpop.f32.mrf.mxu0
  %372 = vmatprep.mubr.f32.mxu0 0.0
  %373 = vmatmul.mubr.f32.gmra.mxu0 %v283
  %v374 = vpop.f32.mrf.mxu0
  %v375 = vadd.f32 %v246, %v374
  %v376 = vpop.f32.mrf.mxu0
  %377 = vmatprep.mubr.f32.mxu0 0.0
  %378 = vmatmul.mubr.f32.gmra.mxu0 %v286
  %v379 = vpop.f32.mrf.mxu0
  %v380 = vadd.f32 %v251, %v379
  %v381 = vpop.f32.mrf.mxu0
  %382 = vmatprep.mubr.f32.mxu0 0.0
  %383 = vmatmul.mubr.f32.gmra.mxu0 %v289
  %v384 = vpop.f32.mrf.mxu0
  %v385 = vadd.f32 %v256, %v384
  %v386 = vpop.f32.mrf.mxu0
  %387 = vmatprep.mubr.f32.mxu0 0.0
  %388 = vmatmul.mubr.f32.gmra.mxu0 %v292
  %v389 = vpop.f32.mrf.mxu0
  %v390 = vadd.f32 %v261, %v389
  %v391 = vpop.f32.mrf.mxu0
  %392 = vmatprep.mubr.f32.mxu0 0.0
  %393 = vmatmul.mubr.f32.gmra.mxu0 %v295
  %v394 = vpop.f32.mrf.mxu0
  %v395 = vadd.f32 %v266, %v394
  %v396 = vpop.f32.mrf.mxu0
  %397 = vmatprep.mubr.f32.mxu0 0.0
  %398 = vmatmul.mubr.f32.gmra.mxu0 %v298
  %v399 = vpop.f32.mrf.mxu0
  %v400 = vadd.f32 %v271, %v399
  %v401 = vpop.f32.mrf.mxu0
  %402 = vmatprep.mubr.f32.mxu0 0.0
  %403 = vmatmul.mubr.f32.gmra.mxu0 %v301
  %v404 = vpop.f32.mrf.mxu0
  %v405 = vadd.f32 %v276, %v404
  %v406 = vpop.f32.mrf.mxu0
  %407 = vdwg.mxu0
  %v408 = vmax.f32 %v370, 0.0
  %v409 = vmax.f32 %v375, 0.0
  %v410 = vmax.f32 %v380, 0.0
  %v411 = vmax.f32 %v385, 0.0
  %v412 = vmax.f32 %v390, 0.0
  %v413 = vmax.f32 %v395, 0.0
  %v414 = vmax.f32 %v400, 0.0
  %v415 = vmax.f32 %v405, 0.0
  %v416 = vld [vmem:[%s5] sm:$0xff]
  %v417 = vld [vmem:[%s5 + $0x8] sm:$0xff]
  %v418 = vld [vmem:[%s6] sm:$0xff]
  %v419 = vld [vmem:[%s6 + $0x8] sm:$0xff]
  %421 = vset.pattern.permute.xlu0 0
  %422 = vperm.xlu0 %421, %v418
  %v423 = vpop.permute.xlu0 %422
  %426 = vset.pattern.permute.xlu0 0
  %427 = vperm.xlu0 %426, %v419
  %v428 = vpop.permute.xlu0 %427
  %v431 = vsel %vm278, %v416, 0
  %v434 = vsel %vm278, %v417, 0
  %436 = vmatprep.subr.mxu0 0.0
  %437 = vmatpush1.msra.mxu0 0.0
  %438 = vmatprep.subr.mxu0 0.0
  %439 = vmatpush1.msra.mxu0 0.0
  %440 = vmatprep.subr.mxu0 0.0
  %441 = vmatpush1.msra.mxu0 0.0
  %442 = vmatprep.subr.mxu0 0.0
  %443 = vmatpush1.msra.mxu0 0.0
  %444 = vmatprep.subr.mxu0 0.0
  %445 = vmatpush1.msra.mxu0 0.0
  %446 = vmatprep.subr.mxu0 0.0
  %447 = vmatpush1.msra.mxu0 0.0
  %448 = vmatprep.subr.mxu0 0.0
  %449 = vmatpush1.msra.mxu0 0.0
  %450 = vmatprep.subr.mxu0 0.0
  %451 = vmatpush1.msra.mxu0 0.0
  %452 = vmatprep.subr.mxu0 0.0
  %453 = vmatpush1.msra.mxu0 %v415
  %454 = vmatprep.subr.mxu0 0.0
  %455 = vmatpush1.msra.mxu0 %v414
  %456 = vmatprep.subr.mxu0 0.0
  %457 = vmatpush1.msra.mxu0 %v413
  %458 = vmatprep.subr.mxu0 0.0
  %459 = vmatpush1.msra.mxu0 %v412
  %460 = vmatprep.subr.mxu0 0.0
  %461 = vmatpush1.msra.mxu0 %v411
  %462 = vmatprep.subr.mxu0 0.0
  %463 = vmatpush1.msra.mxu0 %v410
  %464 = vmatprep.subr.mxu0 0.0
  %465 = vmatpush1.msra.mxu0 %v409
  %466 = vmatprep.subr.mxu0 0.0
  %467 = vmatpush1.msra.mxu0 %v408
  %468 = vmatprep.subr.mxu0 0.0
  %469 = vmatpush2.msra.mxu0 0.0
  %470 = vmatprep.subr.mxu0 0.0
  %471 = vmatpush2.msra.mxu0 0.0
  %472 = vmatprep.subr.mxu0 0.0
  %473 = vmatpush2.msra.mxu0 0.0
  %474 = vmatprep.subr.mxu0 0.0
  %475 = vmatpush2.msra.mxu0 0.0
  %476 = vmatprep.subr.mxu0 0.0
  %477 = vmatpush2.msra.mxu0 0.0
  %478 = vmatprep.subr.mxu0 0.0
  %479 = vmatpush2.msra.mxu0 0.0
  %480 = vmatprep.subr.mxu0 0.0
  %481 = vmatpush2.msra.mxu0 0.0
  %482 = vmatprep.subr.mxu0 0.0
  %483 = vmatpush2.msra.mxu0 0.0
  %484 = vmatprep.subr.mxu0 0.0
  %485 = vmatpush2.msra.mxu0 0.0
  %486 = vmatprep.subr.mxu0 0.0
  %487 = vmatpush2.msra.mxu0 0.0
  %488 = vmatprep.subr.mxu0 0.0
  %489 = vmatpush2.msra.mxu0 0.0
  %490 = vmatprep.subr.mxu0 0.0
  %491 = vmatpush2.msra.mxu0 0.0
  %492 = vmatprep.subr.mxu0 0.0
  %493 = vmatpush2.msra.mxu0 0.0
  %494 = vmatprep.subr.mxu0 0.0
  %495 = vmatpush2.msra.mxu0 0.0
  %496 = vmatprep.subr.mxu0 0.0
  %497 = vmatpush2.msra.mxu0 0.0
  %498 = vmatprep.subr.mxu0 0.0
  %499 = vmatpush2.msra.mxu0 0.0
  %500 = vmatprep.mubr.f32.mxu0 0.0
  %501 = vmatmul.mubr.f32.gmra.mxu0 %v431
  %v502 = vpop.f32.mrf.mxu0
  %v503 = vadd.f32 %v423, %v502
  %v504 = vpop.f32.mrf.mxu0
  %505 = vmatprep.mubr.f32.mxu0 0.0
  %506 = vmatmul.mubr.f32.gmra.mxu0 %v434
  %v507 = vpop.f32.mrf.mxu0
  %v508 = vadd.f32 %v428, %v507
  %v509 = vpop.f32.mrf.mxu0
  %510 = vdwg.mxu0
  %vm511 = vcmp.gt.f32.partialorder %v508, 20.0
  %v512 = vmin.f32 %v508, 20.0
  %v513 = vmul.f32 %v512, 1.442695
  %v514 = vpow.pop %v513
  %v515 = vadd.f32 %v514, 1.0
  %v516 = vlog2.pop %v515
  %v517 = vmul.f32 %v516, 0.6931472
  %v518 = vmul.f32 -0.5, %v514
  %v519 = vadd.f32 %v518, 1.0
  %v520 = vmul.f32 %v519, %v514
  %v521 = vand.u32 2147483647, %v514
  %vm522 = vcmp.lt.f32.partialorder %v521, 0.0004427343
  %v523 = vsel %vm522, %v520, %v517
  %v524 = vsel %vm511, %v508, %v523
  %vm525 = vcmask 64512
  %526 = vst.msk [vmem:[%s7] sm:$0xff] %vm525, %v503
  %527 = vst.msk [vmem:[%s7 + $0x8] sm:$0xff] %vm525, %v524
  // Predicated region
  $region30: #{gaussian_mlp_forward.1} parent=0 // pred_check
    _
  $region31: #{gaussian_mlp_forward.1} parent=0 // pred_check_branch
    %529 = sbr.rel (0) target = $region33
  $region32: #{gaussian_mlp_forward.1} parent=0 // pred_region
    _
  $region33: #{gaussian_mlp_forward.1} parent=0 // pred_fallthru
    _
  // Predicated region
  $region34: #{gaussian_mlp_forward.1} parent=0 // pred_check
    _
  $region35: #{gaussian_mlp_forward.1} parent=0 // pred_check_branch
    %531 = sbr.rel (0) target = $region37
  $region36: #{gaussian_mlp_forward.1} parent=0 // pred_region
    _
  $region37: #{gaussian_mlp_forward.1} parent=0 // pred_fallthru
    _

// kernel: gaussian_mlp_forward.1
$region0: #{gaussian_mlp_forward.1}
  #allocation0 [shape = 'u32[]', space=smem, size = 0x4, offset = 0x4, fixed_abs, tag = 'smem constant byte address 0x4 - core index']
  #allocation1 [shape = 'u32[144,128]{1,0:T(1,128)}', space=vmem, size = 0x12000, scoped, tag = 'internal scratch']
  %s0 = inlined_call_operand.vmem [shape: f32[16,8], index: 0, kind: input, shape index: {}]
  %s1 = inlined_call_operand.vmem [shape: f32[64,16], index: 1, kind: input, shape index: {}]
  %s2 = inlined_call_operand.vmem [shape: f32[64,1], index: 2, kind: input, shape index: {}]
  %s3 = inlined_call_operand.vmem [shape: f32[64,64], index: 3, kind: input, shape index: {}]
  %s4 = inlined_call_operand.vmem [shape: f32[64,1], index: 4, kind: input, shape index: {}]
  %s5 = inlined_call_operand.vmem [shape: f32[16,64], index: 5, kind: input, shape index: {}]
  %s6 = inlined_call_operand.vmem [shape: f32[16,1], index: 6, kind: input, shape index: {}]
  %s7 = inlined_call_operand.vmem [shape: f32[16,8], index: 7, kind: output, shape index: {}]
  %s8 = sld [smem:[#allocation0]]
  $region38: #{gaussian_mlp_forward.1} parent=0
    _
  %s10 = ssub.s32 1, %s8
  %s11 = scalar_select 0, %s10, %s8
  // Predicated region
  $region2: #{gaussian_mlp_forward.1} parent=0 // pred_check
    _
  $region3: #{gaussian_mlp_forward.1} parent=0 // pred_check_branch
    %13 = sbr.rel (0) target = $region5
  $region4: #{gaussian_mlp_forward.1} parent=0 // pred_region
    _
  $region5: #{gaussian_mlp_forward.1} parent=0 // pred_fallthru
    _
  // Predicated region
  $region6: #{gaussian_mlp_forward.1} parent=0 // pred_check
    _
  $region7: #{gaussian_mlp_forward.1} parent=0 // pred_check_branch
    %15 = sbr.rel (0) target = $region9
  $region8: #{gaussian_mlp_forward.1} parent=0 // pred_region
    _
  $region9: #{gaussian_mlp_forward.1} parent=0 // pred_fallthru
    _
  // Predicated region
  $region10: #{gaussian_mlp_forward.1} parent=0 // pred_check
    _
  $region11: #{gaussian_mlp_forward.1} parent=0 // pred_check_branch
    %17 = sbr.rel (0) target = $region13
  $region12: #{gaussian_mlp_forward.1} parent=0 // pred_region
    _
  $region13: #{gaussian_mlp_forward.1} parent=0 // pred_fallthru
    _
  // Predicated region
  $region14: #{gaussian_mlp_forward.1} parent=0 // pred_check
    _
  $region15: #{gaussian_mlp_forward.1} parent=0 // pred_check_branch
    %19 = sbr.rel (0) target = $region17
  $region16: #{gaussian_mlp_forward.1} parent=0 // pred_region
    _
  $region17: #{gaussian_mlp_forward.1} parent=0 // pred_fallthru
    _
  // Predicated region
  $region18: #{gaussian_mlp_forward.1} parent=0 // pred_check
    _
  $region19: #{gaussian_mlp_forward.1} parent=0 // pred_check_branch
    %21 = sbr.rel (0) target = $region21
  $region20: #{gaussian_mlp_forward.1} parent=0 // pred_region
    _
  $region21: #{gaussian_mlp_forward.1} parent=0 // pred_fallthru
    _
  // Predicated region
  $region22: #{gaussian_mlp_forward.1} parent=0 // pred_check
    _
  $region23: #{gaussian_mlp_forward.1} parent=0 // pred_check_branch
    %23 = sbr.rel (0) target = $region25
  $region24: #{gaussian_mlp_forward.1} parent=0 // pred_region
    _
  $region25: #{gaussian_mlp_forward.1} parent=0 // pred_fallthru
    _
  // Predicated region
  $region26: #{gaussian_mlp_forward.1} parent=0 // pred_check
    _
  $region27: #{gaussian_mlp_forward.1} parent=0 // pred_check_branch
    %25 = sbr.rel (0) target = $region29
  $region28: #{gaussian_mlp_forward.1} parent=0 // pred_region
    _
  $region29: #{gaussian_mlp_forward.1} parent=0 // pred_fallthru
    _
  %v26 = vld [vmem:[%s0] sm:$0xff]
  %v27 = vld [vmem:[%s0 + $0x8] sm:$0xff]
  %v28 = vld [vmem:[%s1] sm:$0xff]
  %v29 = vld [vmem:[%s1 + $0x8] sm:$0xff]
  %v30 = vld [vmem:[%s1 + $0x10] sm:$0xff]
  %v31 = vld [vmem:[%s1 + $0x18] sm:$0xff]
  %v32 = vld [vmem:[%s1 + $0x20] sm:$0xff]
  %v33 = vld [vmem:[%s1 + $0x28] sm:$0xff]
  %v34 = vld [vmem:[%s1 + $0x30] sm:$0xff]
  %v35 = vld [vmem:[%s1 + $0x38] sm:$0xff]
  %v36 = vld [vmem:[%s2] sm:$0xff]
  %v37 = vld [vmem:[%s2 + $0x8] sm:$0xff]
  %v38 = vld [vmem:[%s2 + $0x10] sm:$0xff]
  %v39 = vld [vmem:[%s2 + $0x18] sm:$0xff]
  %v40 = vld [vmem:[%s2 + $0x20] sm:$0xff]
  %v41 = vld [vmem:[%s2 + $0x28] sm:$0xff]
  %v42 = vld [vmem:[%s2 + $0x30] sm:$0xff]
  %v43 = vld [vmem:[%s2 + $0x38] sm:$0xff]
  %45 = vset.pattern.permute.xlu0 0
  %46 = vperm.xlu0 %45, %v36
  %v47 = vpop.permute.xlu0 %46
  %50 = vset.pattern.permute.xlu0 0
  %51 = vperm.xlu0 %50, %v37
  %v52 = vpop.permute.xlu0 %51
  %55 = vset.pattern.permute.xlu0 0
  %56 = vperm.xlu0 %55, %v38
  %v57 = vpop.permute.xlu0 %56
  %60 = vset.pattern.permute.xlu0 0
  %61 = vperm.xlu0 %60, %v39
  %v62 = vpop.permute.xlu0 %61
  %65 = vset.pattern.permute.xlu0 0
  %66 = vperm.xlu0 %65, %v40
  %v67 = vpop.permute.xlu0 %66
  %70 = vset.pattern.permute.xlu0 0
  %71 = vperm.xlu0 %70, %v41
  %v72 = vpop.permute.xlu0 %71
  %75 = vset.pattern.permute.xlu0 0
  %76 = vperm.xlu0 %75, %v42
  %v77 = vpop.permute.xlu0 %76
  %80 = vset.pattern.permute.xlu0 0
  %81 = vperm.xlu0 %80, %v43
  %v82 = vpop.permute.xlu0 %81
  %vm84 = vcmask 130048
  %v86 = vsel %vm84, %v28, 0
  %v89 = vsel %vm84, %v29, 0
  %v92 = vsel %vm84, %v30, 0
  %v95 = vsel %vm84, %v31, 0
  %v98 = vsel %vm84, %v32, 0
  %v101 = vsel %vm84, %v33, 0
  %v104 = vsel %vm84, %v34, 0
  %v107 = vsel %vm84, %v35, 0
  %109 = vmatprep.subr.mxu0 0.0
  %110 = vmatpush1.msra.mxu0 0.0
  %111 = vmatprep.subr.mxu0 0.0
  %112 = vmatpush1.msra.mxu0 0.0
  %113 = vmatprep.subr.mxu0 0.0
  %114 = vmatpush1.msra.mxu0 0.0
  %115 = vmatprep.subr.mxu0 0.0
  %116 = vmatpush1.msra.mxu0 0.0
  %117 = vmatprep.subr.mxu0 0.0
  %118 = vmatpush1.msra.mxu0 0.0
  %119 = vmatprep.subr.mxu0 0.0
  %120 = vmatpush1.msra.mxu0 0.0
  %121 = vmatprep.subr.mxu0 0.0
  %122 = vmatpush1.msra.mxu0 0.0
  %123 = vmatprep.subr.mxu0 0.0
  %124 = vmatpush1.msra.mxu0 0.0
  %125 = vmatprep.subr.mxu0 0.0
  %126 = vmatpush1.msra.mxu0 0.0
  %127 = vmatprep.subr.mxu0 0.0
  %128 = vmatpush1.msra.mxu0 0.0
  %129 = vmatprep.subr.mxu0 0.0
  %130 = vmatpush1.msra.mxu0 0.0
  %131 = vmatprep.subr.mxu0 0.0
  %132 = vmatpush1.msra.mxu0 0.0
  %133 = vmatprep.subr.mxu0 0.0
  %134 = vmatpush1.msra.mxu0 0.0
  %135 = vmatprep.subr.mxu0 0.0
  %136 = vmatpush1.msra.mxu0 0.0
  %137 = vmatprep.subr.mxu0 0.0
  %138 = vmatpush1.msra.mxu0 %v27
  %139 = vmatprep.subr.mxu0 0.0
  %140 = vmatpush1.msra.mxu0 %v26
  %141 = vmatprep.subr.mxu0 0.0
  %142 = vmatpush2.msra.mxu0 0.0
  %143 = vmatprep.subr.mxu0 0.0
  %144 = vmatpush2.msra.mxu0 0.0
  %145 = vmatprep.subr.mxu0 0.0
  %146 = vmatpush2.msra.mxu0 0.0
  %147 = vmatprep.subr.mxu0 0.0
  %148 = vmatpush2.msra.mxu0 0.0
  %149 = vmatprep.subr.mxu0 0.0
  %150 = vmatpush2.msra.mxu0 0.0
  %151 = vmatprep.subr.mxu0 0.0
  %152 = vmatpush2.msra.mxu0 0.0
  %153 = vmatprep.subr.mxu0 0.0
  %154 = vmatpush2.msra.mxu0 0.0
  %155 = vmatprep.subr.mxu0 0.0
  %156 = vmatpush2.msra.mxu0 0.0
  %157 = vmatprep.subr.mxu0 0.0
  %158 = vmatpush2.msra.mxu0 0.0
  %159 = vmatprep.subr.mxu0 0.0
  %160 = vmatpush2.msra.mxu0 0.0
  %161 = vmatprep.subr.mxu0 0.0
  %162 = vmatpush2.msra.mxu0 0.0
  %163 = vmatprep.subr.mxu0 0.0
  %164 = vmatpush2.msra.mxu0 0.0
  %165 = vmatprep.subr.mxu0 0.0
  %166 = vmatpush2.msra.mxu0 0.0
  %167 = vmatprep.subr.mxu0 0.0
  %168 = vmatpush2.msra.mxu0 0.0
  %169 = vmatprep.subr.mxu0 0.0
  %170 = vmatpush2.msra.mxu0 0.0
  %171 = vmatprep.subr.mxu0 0.0
  %172 = vmatpush2.msra.mxu0 0.0
  %173 = vmatprep.mubr.f32.mxu0 0.0
  %174 = vmatmul.mubr.f32.gmra.mxu0 %v86
  %v175 = vpop.f32.mrf.mxu0
  %v176 = vadd.f32 %v47, %v175
  %v177 = vpop.f32.mrf.mxu0
  %178 = vmatprep.mubr.f32.mxu0 0.0
  %179 = vmatmul.mubr.f32.gmra.mxu0 %v89
  %v180 = vpop.f32.mrf.mxu0
  %v181 = vadd.f32 %v52, %v180
  %v182 = vpop.f32.mrf.mxu0
  %183 = vmatprep.mubr.f32.mxu0 0.0
  %184 = vmatmul.mubr.f32.gmra.mxu0 %v92
  %v185 = vpop.f32.mrf.mxu0
  %v186 = vadd.f32 %v57, %v185
  %v187 = vpop.f32.mrf.mxu0
  %188 = vmatprep.mubr.f32.mxu0 0.0
  %189 = vmatmul.mubr.f32.gmra.mxu0 %v95
  %v190 = vpop.f32.mrf.mxu0
  %v191 = vadd.f32 %v62, %v190
  %v192 = vpop.f32.mrf.mxu0
  %193 = vmatprep.mubr.f32.mxu0 0.0
  %194 = vmatmul.mubr.f32.gmra.mxu0 %v98
  %v195 = vpop.f32.mrf.mxu0
  %v196 = vadd.f32 %v67, %v195
  %v197 = vpop.f32.mrf.mxu0
  %198 = vmatprep.mubr.f32.mxu0 0.0
  %199 = vmatmul.mubr.f32.gmra.mxu0 %v101
  %v200 = vpop.f32.mrf.mxu0
  %v201 = vadd.f32 %v72, %v200
  %v202 = vpop.f32.mrf.mxu0
  %203 = vmatprep.mubr.f32.mxu0 0.0
  %204 = vmatmul.mubr.f32.gmra.mxu0 %v104
  %v205 = vpop.f32.mrf.mxu0
  %v206 = vadd.f32 %v77, %v205
  %v207 = vpop.f32.mrf.mxu0
  %208 = vmatprep.mubr.f32.mxu0 0.0
  %209 = vmatmul.mubr.f32.gmra.mxu0 %v107
  %v210 = vpop.f32.mrf.mxu0
  %v211 = vadd.f32 %v82, %v210
  %v212 = vpop.f32.mrf.mxu0
  %213 = vdwg.mxu0
  %v214 = vmax.f32 %v176, 0.0
  %v215 = vmax.f32 %v181, 0.0
  %v216 = vmax.f32 %v186, 0.0
  %v217 = vmax.f32 %v191, 0.0
  %v218 = vmax.f32 %v196, 0.0
  %v219 = vmax.f32 %v201, 0.0
  %v220 = vmax.f32 %v206, 0.0
  %v221 = vmax.f32 %v211, 0.0
  %v222 = vld [vmem:[%s3] sm:$0xff]
  %v223 = vld [vmem:[%s3 + $0x8] sm:$0xff]
  %v224 = vld [vmem:[%s3 + $0x10] sm:$0xff]
  %v225 = vld [vmem:[%s3 + $0x18] sm:$0xff]
  %v226 = vld [vmem:[%s3 + $0x20] sm:$0xff]
  %v227 = vld [vmem:[%s3 + $0x28] sm:$0xff]
  %v228 = vld [vmem:[%s3 + $0x30] sm:$0xff]
  %v229 = vld [vmem:[%s3 + $0x38] sm:$0xff]
  %v230 = vld [vmem:[%s4] sm:$0xff]
  %v231 = vld [vmem:[%s4 + $0x8] sm:$0xff]
  %v232 = vld [vmem:[%s4 + $0x10] sm:$0xff]
  %v233 = vld [vmem:[%s4 + $0x18] sm:$0xff]
  %v234 = vld [vmem:[%s4 + $0x20] sm:$0xff]
  %v235 = vld [vmem:[%s4 + $0x28] sm:$0xff]
  %v236 = vld [vmem:[%s4 + $0x30] sm:$0xff]
  %v237 = vld [vmem:[%s4 + $0x38] sm:$0xff]
  %239 = vset.pattern.permute.xlu0 0
  %240 = vperm.xlu0 %239, %v230
  %v241 = vpop.permute.xlu0 %240
  %244 = vset.pattern.permute.xlu0 0
  %245 = vperm.xlu0 %244, %v231
  %v246 = vpop.permute.xlu0 %245
  %249 = vset.pattern.permute.xlu0 0
  %250 = vperm.xlu0 %249, %v232
  %v251 = vpop.permute.xlu0 %250
  %254 = vset.pattern.permute.xlu0 0
  %255 = vperm.xlu0 %254, %v233
  %v256 = vpop.permute.xlu0 %255
  %259 = vset.pattern.permute.xlu0 0
  %260 = vperm.xlu0 %259, %v234
  %v261 = vpop.permute.xlu0 %260
  %264 = vset.pattern.permute.xlu0 0
  %265 = vperm.xlu0 %264, %v235
  %v266 = vpop.permute.xlu0 %265
  %269 = vset.pattern.permute.xlu0 0
  %270 = vperm.xlu0 %269, %v236
  %v271 = vpop.permute.xlu0 %270
  %274 = vset.pattern.permute.xlu0 0
  %275 = vperm.xlu0 %274, %v237
  %v276 = vpop.permute.xlu0 %275
  %vm278 = vcmask 523264
  %v280 = vsel %vm278, %v222, 0
  %v283 = vsel %vm278, %v223, 0
  %v286 = vsel %vm278, %v224, 0
  %v289 = vsel %vm278, %v225, 0
  %v292 = vsel %vm278, %v226, 0
  %v295 = vsel %vm278, %v227, 0
  %v298 = vsel %vm278, %v228, 0
  %v301 = vsel %vm278, %v229, 0
  %303 = vmatprep.subr.mxu0 0.0
  %304 = vmatpush1.msra.mxu0 0.0
  %305 = vmatprep.subr.mxu0 0.0
  %306 = vmatpush1.msra.mxu0 0.0
  %307 = vmatprep.subr.mxu0 0.0
  %308 = vmatpush1.msra.mxu0 0.0
  %309 = vmatprep.subr.mxu0 0.0
  %310 = vmatpush1.msra.mxu0 0.0
  %311 = vmatprep.subr.mxu0 0.0
  %312 = vmatpush1.msra.mxu0 0.0
  %313 = vmatprep.subr.mxu0 0.0
  %314 = vmatpush1.msra.mxu0 0.0
  %315 = vmatprep.subr.mxu0 0.0
  %316 = vmatpush1.msra.mxu0 0.0
  %317 = vmatprep.subr.mxu0 0.0
  %318 = vmatpush1.msra.mxu0 0.0
  %319 = vmatprep.subr.mxu0 0.0
  %320 = vmatpush1.msra.mxu0 %v221
  %321 = vmatprep.subr.mxu0 0.0
  %322 = vmatpush1.msra.mxu0 %v220
  %323 = vmatprep.subr.mxu0 0.0
  %324 = vmatpush1.msra.mxu0 %v219
  %325 = vmatprep.subr.mxu0 0.0
  %326 = vmatpush1.msra.mxu0 %v218
  %327 = vmatprep.subr.mxu0 0.0
  %328 = vmatpush1.msra.mxu0 %v217
  %329 = vmatprep.subr.mxu0 0.0
  %330 = vmatpush1.msra.mxu0 %v216
  %331 = vmatprep.subr.mxu0 0.0
  %332 = vmatpush1.msra.mxu0 %v215
  %333 = vmatprep.subr.mxu0 0.0
  %334 = vmatpush1.msra.mxu0 %v214
  %335 = vmatprep.subr.mxu0 0.0
  %336 = vmatpush2.msra.mxu0 0.0
  %337 = vmatprep.subr.mxu0 0.0
  %338 = vmatpush2.msra.mxu0 0.0
  %339 = vmatprep.subr.mxu0 0.0
  %340 = vmatpush2.msra.mxu0 0.0
  %341 = vmatprep.subr.mxu0 0.0
  %342 = vmatpush2.msra.mxu0 0.0
  %343 = vmatprep.subr.mxu0 0.0
  %344 = vmatpush2.msra.mxu0 0.0
  %345 = vmatprep.subr.mxu0 0.0
  %346 = vmatpush2.msra.mxu0 0.0
  %347 = vmatprep.subr.mxu0 0.0
  %348 = vmatpush2.msra.mxu0 0.0
  %349 = vmatprep.subr.mxu0 0.0
  %350 = vmatpush2.msra.mxu0 0.0
  %351 = vmatprep.subr.mxu0 0.0
  %352 = vmatpush2.msra.mxu0 0.0
  %353 = vmatprep.subr.mxu0 0.0
  %354 = vmatpush2.msra.mxu0 0.0
  %355 = vmatprep.subr.mxu0 0.0
  %356 = vmatpush2.msra.mxu0 0.0
  %357 = vmatprep.subr.mxu0 0.0
  %358 = vmatpush2.msra.mxu0 0.0
  %359 = vmatprep.subr.mxu0 0.0
  %360 = vmatpush2.msra.mxu0 0.0
  %361 = vmatprep.subr.mxu0 0.0
  %362 = vmatpush2.msra.mxu0 0.0
  %363 = vmatprep.subr.mxu0 0.0
  %364 = vmatpush2.msra.mxu0 0.0
  %365 = vmatprep.subr.mxu0 0.0
  %366 = vmatpush2.msra.mxu0 0.0
  %367 = vmatprep.mubr.f32.mxu0 0.0
  %368 = vmatmul.mubr.f32.gmra.mxu0 %v280
  %v369 = vpop.f32.mrf.mxu0
  %v370 = vadd.f32 %v241, %v369
  %v371 = vpop.f32.mrf.mxu0
  %372 = vmatprep.mubr.f32.mxu0 0.0
  %373 = vmatmul.mubr.f32.gmra.mxu0 %v283
  %v374 = vpop.f32.mrf.mxu0
  %v375 = vadd.f32 %v246, %v374
  %v376 = vpop.f32.mrf.mxu0
  %377 = vmatprep.mubr.f32.mxu0 0.0
  %378 = vmatmul.mubr.f32.gmra.mxu0 %v286
  %v379 = vpop.f32.mrf.mxu0
  %v380 = vadd.f32 %v251, %v379
  %v381 = vpop.f32.mrf.mxu0
  %382 = vmatprep.mubr.f32.mxu0 0.0
  %383 = vmatmul.mubr.f32.gmra.mxu0 %v289
  %v384 = vpop.f32.mrf.mxu0
  %v385 = vadd.f32 %v256, %v384
  %v386 = vpop.f32.mrf.mxu0
  %387 = vmatprep.mubr.f32.mxu0 0.0
  %388 = vmatmul.mubr.f32.gmra.mxu0 %v292
  %v389 = vpop.f32.mrf.mxu0
  %v390 = vadd.f32 %v261, %v389
  %v391 = vpop.f32.mrf.mxu0
  %392 = vmatprep.mubr.f32.mxu0 0.0
  %393 = vmatmul.mubr.f32.gmra.mxu0 %v295
  %v394 = vpop.f32.mrf.mxu0
  %v395 = vadd.f32 %v266, %v394
  %v396 = vpop.f32.mrf.mxu0
  %397 = vmatprep.mubr.f32.mxu0 0.0
  %398 = vmatmul.mubr.f32.gmra.mxu0 %v298
  %v399 = vpop.f32.mrf.mxu0
  %v400 = vadd.f32 %v271, %v399
  %v401 = vpop.f32.mrf.mxu0
  %402 = vmatprep.mubr.f32.mxu0 0.0
  %403 = vmatmul.mubr.f32.gmra.mxu0 %v301
  %v404 = vpop.f32.mrf.mxu0
  %v405 = vadd.f32 %v276, %v404
  %v406 = vpop.f32.mrf.mxu0
  %407 = vdwg.mxu0
  %v408 = vmax.f32 %v370, 0.0
  %v409 = vmax.f32 %v375, 0.0
  %v410 = vmax.f32 %v380, 0.0
  %v411 = vmax.f32 %v385, 0.0
  %v412 = vmax.f32 %v390, 0.0
  %v413 = vmax.f32 %v395, 0.0
  %v414 = vmax.f32 %v400, 0.0
  %v415 = vmax.f32 %v405, 0.0
  %v416 = vld [vmem:[%s5] sm:$0xff]
  %v417 = vld [vmem:[%s5 + $0x8] sm:$0xff]
  %v418 = vld [vmem:[%s6] sm:$0xff]
  %v419 = vld [vmem:[%s6 + $0x8] sm:$0xff]
  %421 = vset.pattern.permute.xlu0 0
  %422 = vperm.xlu0 %421, %v418
  %v423 = vpop.permute.xlu0 %422
  %426 = vset.pattern.permute.xlu0 0
  %427 = vperm.xlu0 %426, %v419
  %v428 = vpop.permute.xlu0 %427
  %v431 = vsel %vm278, %v416, 0
  %v434 = vsel %vm278, %v417, 0
  %436 = vmatprep.subr.mxu0 0.0
  %437 = vmatpush1.msra.mxu0 0.0
  %438 = vmatprep.subr.mxu0 0.0
  %439 = vmatpush1.msra.mxu0 0.0
  %440 = vmatprep.subr.mxu0 0.0
  %441 = vmatpush1.msra.mxu0 0.0
  %442 = vmatprep.subr.mxu0 0.0
  %443 = vmatpush1.msra.mxu0 0.0
  %444 = vmatprep.subr.mxu0 0.0
  %445 = vmatpush1.msra.mxu0 0.0
  %446 = vmatprep.subr.mxu0 0.0
  %447 = vmatpush1.msra.mxu0 0.0
  %448 = vmatprep.subr.mxu0 0.0
  %449 = vmatpush1.msra.mxu0 0.0
  %450 = vmatprep.subr.mxu0 0.0
  %451 = vmatpush1.msra.mxu0 0.0
  %452 = vmatprep.subr.mxu0 0.0
  %453 = vmatpush1.msra.mxu0 %v415
  %454 = vmatprep.subr.mxu0 0.0
  %455 = vmatpush1.msra.mxu0 %v414
  %456 = vmatprep.subr.mxu0 0.0
  %457 = vmatpush1.msra.mxu0 %v413
  %458 = vmatprep.subr.mxu0 0.0
  %459 = vmatpush1.msra.mxu0 %v412
  %460 = vmatprep.subr.mxu0 0.0
  %461 = vmatpush1.msra.mxu0 %v411
  %462 = vmatprep.subr.mxu0 0.0
  %463 = vmatpush1.msra.mxu0 %v410
  %464 = vmatprep.subr.mxu0 0.0
  %465 = vmatpush1.msra.mxu0 %v409
  %466 = vmatprep.subr.mxu0 0.0
  %467 = vmatpush1.msra.mxu0 %v408
  %468 = vmatprep.subr.mxu0 0.0
  %469 = vmatpush2.msra.mxu0 0.0
  %470 = vmatprep.subr.mxu0 0.0
  %471 = vmatpush2.msra.mxu0 0.0
  %472 = vmatprep.subr.mxu0 0.0
  %473 = vmatpush2.msra.mxu0 0.0
  %474 = vmatprep.subr.mxu0 0.0
  %475 = vmatpush2.msra.mxu0 0.0
  %476 = vmatprep.subr.mxu0 0.0
  %477 = vmatpush2.msra.mxu0 0.0
  %478 = vmatprep.subr.mxu0 0.0
  %479 = vmatpush2.msra.mxu0 0.0
  %480 = vmatprep.subr.mxu0 0.0
  %481 = vmatpush2.msra.mxu0 0.0
  %482 = vmatprep.subr.mxu0 0.0
  %483 = vmatpush2.msra.mxu0 0.0
  %484 = vmatprep.subr.mxu0 0.0
  %485 = vmatpush2.msra.mxu0 0.0
  %486 = vmatprep.subr.mxu0 0.0
  %487 = vmatpush2.msra.mxu0 0.0
  %488 = vmatprep.subr.mxu0 0.0
  %489 = vmatpush2.msra.mxu0 0.0
  %490 = vmatprep.subr.mxu0 0.0
  %491 = vmatpush2.msra.mxu0 0.0
  %492 = vmatprep.subr.mxu0 0.0
  %493 = vmatpush2.msra.mxu0 0.0
  %494 = vmatprep.subr.mxu0 0.0
  %495 = vmatpush2.msra.mxu0 0.0
  %496 = vmatprep.subr.mxu0 0.0
  %497 = vmatpush2.msra.mxu0 0.0
  %498 = vmatprep.subr.mxu0 0.0
  %499 = vmatpush2.msra.mxu0 0.0
  %500 = vmatprep.mubr.f32.mxu0 0.0
  %501 = vmatmul.mubr.f32.gmra.mxu0 %v431
  %v502 = vpop.f32.mrf.mxu0
  %v503 = vadd.f32 %v423, %v502
  %v504 = vpop.f32.mrf.mxu0
  %505 = vmatprep.mubr.f32.mxu0 0.0
  %506 = vmatmul.mubr.f32.gmra.mxu0 %v434
  %v507 = vpop.f32.mrf.mxu0
  %v508 = vadd.f32 %v428, %v507
  %v509 = vpop.f32.mrf.mxu0
  %510 = vdwg.mxu0
  %vm511 = vcmp.gt.f32.partialorder %v508, 20.0
  %v512 = vmin.f32 %v508, 20.0
  %v513 = vmul.f32 %v512, 1.442695
  %v514 = vpow.pop %v513
  %v515 = vadd.f32 %v514, 1.0
  %v516 = vlog2.pop %v515
  %v517 = vmul.f32 %v516, 0.6931472
  %v518 = vmul.f32 -0.5, %v514
  %v519 = vadd.f32 %v518, 1.0
  %v520 = vmul.f32 %v519, %v514
  %v521 = vand.u32 2147483647, %v514
  %vm522 = vcmp.lt.f32.partialorder %v521, 0.0004427343
  %v523 = vsel %vm522, %v520, %v517
  %v524 = vsel %vm511, %v508, %v523
  %vm525 = vcmask 64512
  %526 = vst.msk [vmem:[%s7] sm:$0xff] %vm525, %v503
  %527 = vst.msk [vmem:[%s7 + $0x8] sm:$0xff] %vm525, %v524
  // Predicated region
  $region30: #{gaussian_mlp_forward.1} parent=0 // pred_check
    _
  $region31: #{gaussian_mlp_forward.1} parent=0 // pred_check_branch
    %529 = sbr.rel (0) target = $region33
  $region32: #{gaussian_mlp_forward.1} parent=0 // pred_region
    _
  $region33: #{gaussian_mlp_forward.1} parent=0 // pred_fallthru
    _
  // Predicated region
  $region34: #{gaussian_mlp_forward.1} parent=0 // pred_check
    _
  $region35: #{gaussian_mlp_forward.1} parent=0 // pred_check_branch
    %531 = sbr.rel (0) target = $region37
  $region36: #{gaussian_mlp_forward.1} parent=0 // pred_region
    _
  $region37: #{gaussian_mlp_forward.1} parent=0 // pred_fallthru
    _

</llo_original>
